<compile_context>
chip_gen: v6e
topology: v6e:2x2x1
jax: 0.10.0
libtpu: 0.0.40
codegen_flags: <defaults>
</compile_context>

<pallas_src>
import jax
import jax.numpy as jnp
from jax.experimental import pallas as pl
from jax.experimental.pallas import tpu as pltpu


def conv1x1_relu_kernel(w_ref, b_ref, x_ref, o_ref):
    # w_ref: (C_out, C_in) f32   x_ref: (C_in, TILE_M) f32
    # b_ref: (C_out, 1)    f32   o_ref: (C_out, TILE_M) f32
    w = w_ref[...].astype(jnp.bfloat16)          # in-kernel cast (VPU, hidden)
    x = x_ref[...].astype(jnp.bfloat16)
    acc = jnp.dot(w, x, preferred_element_type=jnp.float32)   # MXU, f32 accum
    o_ref[...] = jnp.maximum(acc + b_ref[...], 0.0)           # bias + ReLU, f32


def _pick_tile_m(hw, lane_tiles=2):
    """Balanced, 128-lane-aligned spatial tiles (<= `lane_tiles` of them)."""
    if hw <= 256:
        return hw                                 # single full-row step
    tile = pl.cdiv(hw, lane_tiles)
    tile = ((tile + 127) // 128) * 128            # lane-dense (multiple of 128)
    return min(tile, hw)


def conv1x1_relu(x_nchw, weight, bias):
    """x_nchw: (N, C_in, H, W); weight: (C_out, C_in, 1, 1); bias: (C_out,)."""
    N, C_in, H, W = x_nchw.shape
    C_out = weight.shape[0]
    HW = H * W

    # Free reshapes only (contiguous memory) — no transposes, no dtype casts.
    w_mat = weight.reshape(C_out, C_in).astype(jnp.float32)
    b_mat = bias.astype(jnp.float32).reshape(C_out, 1)

    tile_m = _pick_tile_m(HW)
    m_tiles = pl.cdiv(HW, tile_m)

    cost = pl.CostEstimate(
        flops=2 * N * HW * C_in * C_out,
        transcendentals=0,
        bytes_accessed=(N * C_in * HW * 4 + w_mat.size * 4 + b_mat.size * 4
                        + N * C_out * HW * 4),
    )

    if N == 1:
        # Drop the degenerate batch axis entirely: grid = (m_tiles,).
        x_mat = x_nchw.reshape(C_in, HW)
        out_mat = pl.pallas_call(
            conv1x1_relu_kernel,
            out_shape=jax.ShapeDtypeStruct((C_out, HW), jnp.float32),
            grid_spec=pltpu.PrefetchScalarGridSpec(
                num_scalar_prefetch=0,
                grid=(m_tiles,),
                in_specs=[
                    pl.BlockSpec((C_out, C_in), lambda m: (0, 0)),  # W resident
                    pl.BlockSpec((C_out, 1), lambda m: (0, 0)),     # bias resident
                    pl.BlockSpec((C_in, tile_m), lambda m: (0, m)),
                ],
                out_specs=pl.BlockSpec((C_out, tile_m), lambda m: (0, m)),
            ),
            compiler_params=pltpu.CompilerParams(
                dimension_semantics=("parallel",)),
            cost_estimate=cost,
        )(w_mat, b_mat, x_mat)
        return out_mat.reshape(1, C_out, H, W)

    # General N > 1 fallback: keep the batch grid axis (still no transposes).
    x_mat = x_nchw.reshape(N, C_in, HW)
    out_mat = pl.pallas_call(
        conv1x1_relu_kernel,
        out_shape=jax.ShapeDtypeStruct((N, C_out, HW), jnp.float32),
        grid_spec=pltpu.PrefetchScalarGridSpec(
            num_scalar_prefetch=0,
            grid=(N, m_tiles),
            in_specs=[
                pl.BlockSpec((C_out, C_in), lambda n, m: (0, 0)),
                pl.BlockSpec((C_out, 1), lambda n, m: (0, 0)),
                pl.BlockSpec((None, C_in, tile_m), lambda n, m: (n, 0, m)),
            ],
            out_specs=pl.BlockSpec((None, C_out, tile_m), lambda n, m: (n, 0, m)),
        ),
        compiler_params=pltpu.CompilerParams(
            dimension_semantics=("parallel", "parallel")),
        cost_estimate=cost,
    )(w_mat, b_mat, x_mat)
    return out_mat.reshape(N, C_out, H, W)


if __name__ == "__main__":
    key = jax.random.PRNGKey(0)
    kx, kw, kb = jax.random.split(key, 3)

    # Shapes implied by the module: Conv2d(64, 256, k=1), x: [1, 64, 27, 27]
    N, C_in, H, W = 1, 64, 27, 27
    C_out = 256

    x = jax.random.normal(kx, (N, C_in, H, W), dtype=jnp.float32)
    bound = 1.0 / (C_in ** 0.5)
    weight = jax.random.uniform(kw, (C_out, C_in, 1, 1), jnp.float32, -bound, bound)
    bias = jax.random.uniform(kb, (C_out,), jnp.float32, -bound, bound)

    out = conv1x1_relu(x, weight, bias)
    jax.block_until_ready(out)
    assert out.shape == (N, C_out, H, W)

    # Reference with identical bf16 input quantization, f32 accumulation.
    xb = x.astype(jnp.bfloat16).astype(jnp.float32)
    wb = weight.reshape(C_out, C_in).astype(jnp.bfloat16).astype(jnp.float32)
    ref = jnp.einsum("nchw,oc->nohw", xb, wb)
    ref = jnp.maximum(ref + bias[None, :, None, None], 0.0)
    assert jnp.allclose(out, ref, atol=2e-3, rtol=2e-3)

    # Also stays close to the full-f32 module semantics (bf16 mantissa only).
    ref32 = jnp.einsum("nchw,oc->nohw", x, weight.reshape(C_out, C_in))
    ref32 = jnp.maximum(ref32 + bias[None, :, None, None], 0.0)
    assert jnp.allclose(out, ref32, atol=5e-2, rtol=5e-2)

    print("KERNEL_OK")
</pallas_src>

<mosaic_0001>
module attributes {stable_mosaic.version = 11 : i64} {
  func.func @conv1x1_relu_kernel(%arg0: i32, %arg1: memref<256x64xf32, #tpu.memory_space<vmem>>, %arg2: memref<256x1xf32, #tpu.memory_space<vmem>>, %arg3: memref<64x384xf32, #tpu.memory_space<vmem>>, %arg4: memref<256x384xf32, #tpu.memory_space<vmem>>) attributes {dimension_semantics = [#tpu.dimension_semantics<parallel>], iteration_bounds = array<i64: 2>, scalar_prefetch = 0 : i64, scratch_operands = 0 : i64, tpu.core_type = #tpu.core_type<tc>, window_params = [{pipeline_mode = #tpu.pipeline_mode<synchronous>, transform_indices = @transform_0, window_bounds = array<i64: 256, 64>}, {pipeline_mode = #tpu.pipeline_mode<synchronous>, transform_indices = @transform_1, window_bounds = array<i64: 256, 1>}, {transform_indices = @transform_2, window_bounds = array<i64: 64, 384>}, {transform_indices = @transform_3, window_bounds = array<i64: 256, 384>}]} {
    %c0 = arith.constant 0 : index
    %c0_0 = arith.constant 0 : index
    %0 = vector.load %arg1[%c0, %c0_0] : memref<256x64xf32, #tpu.memory_space<vmem>>, vector<256x64xf32>
    %1 = arith.truncf %0 : vector<256x64xf32> to vector<256x64xbf16>
    %c0_1 = arith.constant 0 : index
    %c0_2 = arith.constant 0 : index
    %2 = vector.load %arg3[%c0_1, %c0_2] : memref<64x384xf32, #tpu.memory_space<vmem>>, vector<64x384xf32>
    %3 = arith.truncf %2 : vector<64x384xf32> to vector<64x384xbf16>
    %cst = arith.constant dense<0.000000e+00> : vector<256x384xf32>
    %4 = tpu.matmul %1, %3, %cst {dimension_numbers = #tpu.dot_dimension_numbers<[1], [0], [0], [1], [0, 0, 1, 1], [], []>} : vector<256x64xbf16>, vector<64x384xbf16>, vector<256x384xf32> -> vector<256x384xf32>
    %c0_3 = arith.constant 0 : index
    %c0_4 = arith.constant 0 : index
    %5 = vector.load %arg2[%c0_3, %c0_4] : memref<256x1xf32, #tpu.memory_space<vmem>>, vector<256x1xf32>
    %6 = vector.broadcast %5 : vector<256x1xf32> to vector<256x384xf32>
    %7 = arith.addf %4, %6 : vector<256x384xf32>
    %cst_5 = arith.constant 0.000000e+00 : f32
    %8 = vector.broadcast %cst_5 : f32 to vector<256x384xf32>
    %9 = arith.maximumf %7, %8 : vector<256x384xf32>
    %c0_6 = arith.constant 0 : index
    %c0_7 = arith.constant 0 : index
    %10 = vector.load %arg4[%c0_6, %c0_7] : memref<256x384xf32, #tpu.memory_space<vmem>>, vector<256x384xf32>
    tpu.vector_store %arg4[%c0_6, %c0_7], %9 {strides = array<i32>} : memref<256x384xf32, #tpu.memory_space<vmem>>, vector<256x384xf32>,
    return
  }
  func.func @transform_0(%arg0: i32) -> (i32, i32) {
    %c0_i32 = arith.constant 0 : i32
    %c0_i32_0 = arith.constant 0 : i32
    %c0_i32_1 = arith.constant 0 : i32
    return %c0_i32, %c0_i32_0 : i32, i32
  }
  func.func @transform_1(%arg0: i32) -> (i32, i32) {
    %c0_i32 = arith.constant 0 : i32
    %c0_i32_0 = arith.constant 0 : i32
    %c0_i32_1 = arith.constant 0 : i32
    return %c0_i32, %c0_i32_0 : i32, i32
  }
  func.func @transform_2(%arg0: i32) -> (i32, i32) {
    %c0_i32 = arith.constant 0 : i32
    %c0_i32_0 = arith.constant 0 : i32
    return %c0_i32, %arg0 : i32, i32
  }
  func.func @transform_3(%arg0: i32) -> (i32, i32) {
    %c0_i32 = arith.constant 0 : i32
    %c0_i32_0 = arith.constant 0 : i32
    return %c0_i32, %arg0 : i32, i32
  }
}

</mosaic_0001>

<llo_original>
// kernel: tpu_custom_call.1
$region0: #{tpu_custom_call.1}
  #allocation0 [shape = 'u32[]', space=smem, size = 0x4, offset = 0x4, fixed_abs, tag = 'smem constant byte address 0x4 - core index']
  #allocation1 [shape = 'u32[144,128]{1,0:T(1,128)}', space=vmem, size = 0x12000, scoped, tag = 'internal scratch']
  %s0 = inlined_call_operand.vmem [shape: f32[256,64], index: 0, kind: input, shape index: {}]
  %s1 = inlined_call_operand.vmem [shape: f32[256,1], index: 1, kind: input, shape index: {}]
  %s2 = inlined_call_operand.vmem [shape: f32[64,729], index: 2, kind: input, shape index: {}]
  %s3 = inlined_call_operand.vmem [shape: f32[256,729], index: 3, kind: output, shape index: {}]
  %s4 = sld [smem:[#allocation0]]
  $region87: #{tpu_custom_call.1} parent=0
    _
  %s6 = ssub.s32 1, %s4
  %s7 = scalar_select 0, %s6, %s4
  $region1: #{tpu_custom_call.1} parent=0
    #allocation2 [shape = 'u8[196608]{0}', space=vmem, size = 0x30000, scoped, tag = 'input window, operand 2']
    #allocation3 [shape = 'u8[786432]{0}', space=vmem, size = 0xc0000, scoped, tag = 'output window, operand 0']
    loop: start=0, step=1, limit=4
    $region2: #{tpu_custom_call.1} parent=1 // loop_pre_header
      _
    $region3: #{tpu_custom_call.1} parent=1 // loop_header
      %s9 = sphi 0, %s13
      %p10 = scmp.ge.s32.totalorder %s9, 4
      %s17 = sphi 0, %s17
      %s19 = sphi 0, %s17
      %s20 = sphi 0, %s19
      %s34 = sphi 0, %s20
      %s38 = sphi 0, %s38
      %s40 = sphi 0, %s38
      %s41 = sphi 0, %s40
      %s55 = sphi 0, %s41
      %s61 = sphi 0, %s63
      %s64 = sphi 0, %s61
      %s65 = sphi 0, %s64
      %s81 = sphi 0, %s65
      %s87 = sphi 0, %s89
      %s90 = sphi 0, %s87
      %s91 = sphi 0, %s90
      %s107 = sphi 0, %s91
    $region4: #{tpu_custom_call.1} parent=1 // loop_header_branch
      %12 = sbr.rel (%p10) target = $region8
    $region5: #{tpu_custom_call.1} parent=1 // loop_body
      %s14 = ssub.s32 %s9, 1
      %s15 = ssub.s32 %s9, 2
      %s16 = sadd.s32 %s9, 1
      %s18 = sadd.s32 %s17, 1
      %p21 = scmp.eq.s32.totalorder %s9, 1
      %p22 = scmp.ne.s32.totalorder %s17, %s19
      %p23 = scmp.eq.s32.totalorder %s9, 0
      %p24 = por %p22, %p23
      %p25 = scmp.ne.s32.totalorder %s17, %s19
      %p26 = scmp.eq.s32.totalorder %s14, 1
      %p27 = por %p25, %p26
      %p28 = scmp.ne.s32.totalorder %s19, %s20
      %p29 = scmp.eq.s32.totalorder %s14, 0
      %p30 = por %p28, %p29
      %p31 = scmp.ne.s32.totalorder %s19, %s20
      %p32 = scmp.eq.s32.totalorder %s15, 1
      %p33 = por %p31, %p32
      %p35 = scmp.ne.s32.totalorder %s20, %s34
      %p36 = scmp.eq.s32.totalorder %s15, 0
      %p37 = por %p35, %p36
      %s39 = sadd.s32 %s38, 1
      %p42 = scmp.eq.s32.totalorder %s9, 1
      %p43 = scmp.ne.s32.totalorder %s38, %s40
      %p44 = scmp.eq.s32.totalorder %s9, 0
      %p45 = por %p43, %p44
      %p46 = scmp.ne.s32.totalorder %s38, %s40
      %p47 = scmp.eq.s32.totalorder %s14, 1
      %p48 = por %p46, %p47
      %p49 = scmp.ne.s32.totalorder %s40, %s41
      %p50 = scmp.eq.s32.totalorder %s14, 0
      %p51 = por %p49, %p50
      %p52 = scmp.ne.s32.totalorder %s40, %s41
      %p53 = scmp.eq.s32.totalorder %s15, 1
      %p54 = por %p52, %p53
      %p56 = scmp.ne.s32.totalorder %s41, %s55
      %p57 = scmp.eq.s32.totalorder %s15, 0
      %p58 = por %p56, %p57
      %s59 = ssub.s32 %s9, %s16
      %p60 = scmp.eq.s32.totalorder %s59, 0
      %s62 = sadd.s32 %s61, 1
      %s63 = scalar_select %p60, %s61, %s62
      %p66 = pneg %p60
      %p67 = scmp.eq.s32.totalorder %s9, 1
      %p68 = por %p66, %p67
      %p69 = scmp.ne.s32.totalorder %s61, %s64
      %p70 = scmp.eq.s32.totalorder %s9, 0
      %p71 = por %p69, %p70
      %p72 = scmp.ne.s32.totalorder %s61, %s64
      %p73 = scmp.eq.s32.totalorder %s14, 1
      %p74 = por %p72, %p73
      %p75 = scmp.ne.s32.totalorder %s64, %s65
      %p76 = scmp.eq.s32.totalorder %s14, 0
      %p77 = por %p75, %p76
      %p78 = scmp.ne.s32.totalorder %s64, %s65
      %p79 = scmp.eq.s32.totalorder %s15, 1
      %p80 = por %p78, %p79
      %p82 = scmp.ne.s32.totalorder %s65, %s81
      %p83 = scmp.eq.s32.totalorder %s15, 0
      %p84 = por %p82, %p83
      %s85 = ssub.s32 %s9, %s16
      %p86 = scmp.eq.s32.totalorder %s85, 0
      %s88 = sadd.s32 %s87, 1
      %s89 = scalar_select %p86, %s87, %s88
      %p92 = pneg %p86
      %p93 = scmp.eq.s32.totalorder %s9, 1
      %p94 = por %p92, %p93
      %p95 = scmp.ne.s32.totalorder %s87, %s90
      %p96 = scmp.eq.s32.totalorder %s9, 0
      %p97 = por %p95, %p96
      %p98 = scmp.ne.s32.totalorder %s87, %s90
      %p99 = scmp.eq.s32.totalorder %s14, 1
      %p100 = por %p98, %p99
      %p101 = scmp.ne.s32.totalorder %s90, %s91
      %p102 = scmp.eq.s32.totalorder %s14, 0
      %p103 = por %p101, %p102
      %p104 = scmp.ne.s32.totalorder %s90, %s91
      %p105 = scmp.eq.s32.totalorder %s15, 1
      %p106 = por %p104, %p105
      %p108 = scmp.ne.s32.totalorder %s91, %s107
      %p109 = scmp.eq.s32.totalorder %s15, 0
      %p110 = por %p108, %p109
      %p111 = scmp.le.s32.totalorder 1, %s9
      %p112 = scmp.lt.s32.totalorder %s9, 3
      %p113 = pnand %p111, %p112
      %p114 = pneg %p113
      // Predicated region
      $region9: #{tpu_custom_call.1} parent=5 // pred_check
        _
      $region10: #{tpu_custom_call.1} parent=5 // pred_check_branch
        %116 = sbr.rel (%p113) target = $region12
      $region11: #{tpu_custom_call.1} parent=5 // pred_region
        %s117 = ssub.s32 %s9, 1
        // Predicated region
        $region13: #{tpu_custom_call.1} parent=11 // pred_check
          %p118 = pneg %p30
        $region14: #{tpu_custom_call.1} parent=11 // pred_check_branch
          %120 = sbr.rel (%p118) target = $region16
        $region15: #{tpu_custom_call.1} parent=11 // pred_region
          _
        $region16: #{tpu_custom_call.1} parent=11 // pred_fallthru
          _
        // Predicated region
        $region17: #{tpu_custom_call.1} parent=11 // pred_check
          %p121 = pneg %p51
        $region18: #{tpu_custom_call.1} parent=11 // pred_check_branch
          %123 = sbr.rel (%p121) target = $region20
        $region19: #{tpu_custom_call.1} parent=11 // pred_region
          _
        $region20: #{tpu_custom_call.1} parent=11 // pred_fallthru
          _
      $region12: #{tpu_custom_call.1} parent=5 // pred_fallthru
        _
      %p124 = scmp.lt.s32.totalorder %s9, 2
      // Predicated region
      $region21: #{tpu_custom_call.1} parent=5 // pred_check
        %p125 = pneg %p124
      $region22: #{tpu_custom_call.1} parent=5 // pred_check_branch
        %127 = sbr.rel (%p125) target = $region24
      $region23: #{tpu_custom_call.1} parent=5 // pred_region
        // Predicated region
        $region25: #{tpu_custom_call.1} parent=23 // pred_check
          %p128 = pneg %p71
        $region26: #{tpu_custom_call.1} parent=23 // pred_check_branch
          %130 = sbr.rel (%p128) target = $region28
        $region27: #{tpu_custom_call.1} parent=23 // pred_region
          %s131 = sand.u32 %s61, 1
          %s132 = sand.u32 %s61, 1
          %s133 = smul.addr %s132, 192
          %s134 = scalar_lea.vmem [#allocation2], %s133
          %s135 = smul.u32 3, %s9
          %s136 = smul.addr %s135, 8
          %s137 = scalar_lea.vmem %s2, %s136
          // Predicated region
          $region29: #{tpu_custom_call.1} parent=27 // pred_check
            _
          $region30: #{tpu_custom_call.1} parent=27 // pred_check_branch
            %139 = sbr.rel (0) target = $region32
          $region31: #{tpu_custom_call.1} parent=27 // pred_region
            // Predicated region
            $region33: #{tpu_custom_call.1} parent=31 // pred_check
              _
            $region34: #{tpu_custom_call.1} parent=31 // pred_check_branch
              %141 = sbr.rel (0) target = $region36
            $region35: #{tpu_custom_call.1} parent=31 // pred_region
              loop: start=0, step=1, limit=1
              $region37: #{tpu_custom_call.1} parent=35 // loop_pre_header
                _
              $region38: #{tpu_custom_call.1} parent=35 // loop_header
                %s143 = sphi 0, %s147
                %p144 = scmp.ge.s32.totalorder %s143, 1
                %s148 = sphi %s137, %s137
                %s149 = sphi %s134, %s134
              $region39: #{tpu_custom_call.1} parent=35 // loop_header_branch
                %146 = sbr.rel (%p144) target = $region43
              $region40: #{tpu_custom_call.1} parent=35 // loop_body
                %v150 = vld [vmem:[%s148] sm:$0xff]
                %151 = vst [vmem:[%s149] sm:$0xff] %v150
                %v152 = vld [vmem:[%s148 + $0x8] sm:$0xff]
                %153 = vst [vmem:[%s149 + $0x8] sm:$0xff] %v152
                %v154 = vld [vmem:[%s148 + $0x10] sm:$0xff]
                %155 = vst [vmem:[%s149 + $0x10] sm:$0xff] %v154
                %v156 = vld [vmem:[%s148 + $0x30] sm:$0xff]
                %157 = vst [vmem:[%s149 + $0x18] sm:$0xff] %v156
                %v158 = vld [vmem:[%s148 + $0x38] sm:$0xff]
                %159 = vst [vmem:[%s149 + $0x20] sm:$0xff] %v158
                %v160 = vld [vmem:[%s148 + $0x40] sm:$0xff]
                %161 = vst [vmem:[%s149 + $0x28] sm:$0xff] %v160
                %v162 = vld [vmem:[%s148 + $0x60] sm:$0xff]
                %163 = vst [vmem:[%s149 + $0x30] sm:$0xff] %v162
                %v164 = vld [vmem:[%s148 + $0x68] sm:$0xff]
                %165 = vst [vmem:[%s149 + $0x38] sm:$0xff] %v164
                %v166 = vld [vmem:[%s148 + $0x70] sm:$0xff]
                %167 = vst [vmem:[%s149 + $0x40] sm:$0xff] %v166
                %v168 = vld [vmem:[%s148 + $0x90] sm:$0xff]
                %169 = vst [vmem:[%s149 + $0x48] sm:$0xff] %v168
                %v170 = vld [vmem:[%s148 + $0x98] sm:$0xff]
                %171 = vst [vmem:[%s149 + $0x50] sm:$0xff] %v170
                %v172 = vld [vmem:[%s148 + $0xa0] sm:$0xff]
                %173 = vst [vmem:[%s149 + $0x58] sm:$0xff] %v172
                %v174 = vld [vmem:[%s148 + $0xc0] sm:$0xff]
                %175 = vst [vmem:[%s149 + $0x60] sm:$0xff] %v174
                %v176 = vld [vmem:[%s148 + $0xc8] sm:$0xff]
                %177 = vst [vmem:[%s149 + $0x68] sm:$0xff] %v176
                %v178 = vld [vmem:[%s148 + $0xd0] sm:$0xff]
                %179 = vst [vmem:[%s149 + $0x70] sm:$0xff] %v178
                %v180 = vld [vmem:[%s148 + $0xf0] sm:$0xff]
                %181 = vst [vmem:[%s149 + $0x78] sm:$0xff] %v180
                %v182 = vld [vmem:[%s148 + $0xf8] sm:$0xff]
                %183 = vst [vmem:[%s149 + $0x80] sm:$0xff] %v182
                %v184 = vld [vmem:[%s148 + $0x100] sm:$0xff]
                %185 = vst [vmem:[%s149 + $0x88] sm:$0xff] %v184
                %v186 = vld [vmem:[%s148 + $0x120] sm:$0xff]
                %187 = vst [vmem:[%s149 + $0x90] sm:$0xff] %v186
                %v188 = vld [vmem:[%s148 + $0x128] sm:$0xff]
                %189 = vst [vmem:[%s149 + $0x98] sm:$0xff] %v188
                %v190 = vld [vmem:[%s148 + $0x130] sm:$0xff]
                %191 = vst [vmem:[%s149 + $0xa0] sm:$0xff] %v190
                %v192 = vld [vmem:[%s148 + $0x150] sm:$0xff]
                %193 = vst [vmem:[%s149 + $0xa8] sm:$0xff] %v192
                %v194 = vld [vmem:[%s148 + $0x158] sm:$0xff]
                %195 = vst [vmem:[%s149 + $0xb0] sm:$0xff] %v194
                %v196 = vld [vmem:[%s148 + $0x160] sm:$0xff]
                %197 = vst [vmem:[%s149 + $0xb8] sm:$0xff] %v196
              $region41: #{tpu_custom_call.1} parent=35 // loop_footer
                %s147 = sadd.s32 1, %s143
              $region42: #{tpu_custom_call.1} parent=35 // loop_footer_branch
                %142 = sbr.rel target = $region38
              $region43: #{tpu_custom_call.1} parent=35 // loop_exit
                _
            $region36: #{tpu_custom_call.1} parent=31 // pred_fallthru
              _
            // Predicated region
            $region44: #{tpu_custom_call.1} parent=31 // pred_check
              _
            $region45: #{tpu_custom_call.1} parent=31 // pred_check_branch
              %199 = sbr.rel target = $region47
            $region46: #{tpu_custom_call.1} parent=31 // pred_region
              _
            $region47: #{tpu_custom_call.1} parent=31 // pred_fallthru
              _
          $region32: #{tpu_custom_call.1} parent=27 // pred_fallthru
            _
          %200 = vnop
        $region28: #{tpu_custom_call.1} parent=23 // pred_fallthru
          _
      $region24: #{tpu_custom_call.1} parent=5 // pred_fallthru
        _
      %p201 = scmp.le.s32.totalorder 1, %s9
      %p202 = scmp.lt.s32.totalorder %s9, 3
      %p203 = pnand %p201, %p202
      %p204 = pneg %p203
      // Predicated region
      $region48: #{tpu_custom_call.1} parent=5 // pred_check
        _
      $region49: #{tpu_custom_call.1} parent=5 // pred_check_branch
        %206 = sbr.rel (%p203) target = $region51
      $region50: #{tpu_custom_call.1} parent=5 // pred_region
        %s207 = ssub.s32 %s9, 1
        %s208 = sand.u32 %s64, 1
        %s209 = sand.u32 %s64, 1
        %s210 = smul.addr %s209, 192
        %s211 = scalar_lea.vmem [#allocation2], %s210
        // Predicated region
        $region52: #{tpu_custom_call.1} parent=50 // pred_check
          %p212 = pneg %p77
        $region53: #{tpu_custom_call.1} parent=50 // pred_check_branch
          %214 = sbr.rel (%p212) target = $region55
        $region54: #{tpu_custom_call.1} parent=50 // pred_region
          _
        $region55: #{tpu_custom_call.1} parent=50 // pred_fallthru
          _
        %p215 = pneg %p30
        %p216 = pneg %p27
        %p217 = pneg %p51
        %p218 = pneg %p48
        %s219 = sand.u32 %s64, 1
        %s220 = sand.u32 %s64, 1
        %s221 = smul.addr %s220, 192
        %s222 = scalar_lea.vmem [#allocation2], %s221
        %p223 = pneg %p77
        %p224 = pneg %p74
        %p225 = pneg %p103
        %p226 = pneg %p100
        %s227 = sand.u32 %s90, 1
        %s228 = sand.u32 %s90, 1
        %s229 = smul.addr %s228, 768
        %s230 = scalar_lea.vmem [#allocation3], %s229
        %s231 = smul.u32 3, %s14
        %s232 = smul.u32 3, %s14
        %v234 = vld [vmem:[%s0] sm:$0xff]
        %v235 = vld [vmem:[%s0 + $0x8] sm:$0xff]
        %v236 = vld [vmem:[%s0 + $0x10] sm:$0xff]
        %v237 = vld [vmem:[%s0 + $0x18] sm:$0xff]
        %v238 = vld [vmem:[%s0 + $0x20] sm:$0xff]
        %v239 = vld [vmem:[%s0 + $0x28] sm:$0xff]
        %v240 = vld [vmem:[%s0 + $0x30] sm:$0xff]
        %v241 = vld [vmem:[%s0 + $0x38] sm:$0xff]
        %v242 = vld [vmem:[%s0 + $0x40] sm:$0xff]
        %v243 = vld [vmem:[%s0 + $0x48] sm:$0xff]
        %v244 = vld [vmem:[%s0 + $0x50] sm:$0xff]
        %v245 = vld [vmem:[%s0 + $0x58] sm:$0xff]
        %v246 = vld [vmem:[%s0 + $0x60] sm:$0xff]
        %v247 = vld [vmem:[%s0 + $0x68] sm:$0xff]
        %v248 = vld [vmem:[%s0 + $0x70] sm:$0xff]
        %v249 = vld [vmem:[%s0 + $0x78] sm:$0xff]
        %v250 = vld [vmem:[%s0 + $0x80] sm:$0xff]
        %v251 = vld [vmem:[%s0 + $0x88] sm:$0xff]
        %v252 = vld [vmem:[%s0 + $0x90] sm:$0xff]
        %v253 = vld [vmem:[%s0 + $0x98] sm:$0xff]
        %v254 = vld [vmem:[%s0 + $0xa0] sm:$0xff]
        %v255 = vld [vmem:[%s0 + $0xa8] sm:$0xff]
        %v256 = vld [vmem:[%s0 + $0xb0] sm:$0xff]
        %v257 = vld [vmem:[%s0 + $0xb8] sm:$0xff]
        %v258 = vld [vmem:[%s0 + $0xc0] sm:$0xff]
        %v259 = vld [vmem:[%s0 + $0xc8] sm:$0xff]
        %v260 = vld [vmem:[%s0 + $0xd0] sm:$0xff]
        %v261 = vld [vmem:[%s0 + $0xd8] sm:$0xff]
        %v262 = vld [vmem:[%s0 + $0xe0] sm:$0xff]
        %v263 = vld [vmem:[%s0 + $0xe8] sm:$0xff]
        %v264 = vld [vmem:[%s0 + $0xf0] sm:$0xff]
        %v265 = vld [vmem:[%s0 + $0xf8] sm:$0xff]
        %v266 = vpack.c.bf16 %v235, %v234
        %v267 = vpack.c.bf16 %v237, %v236
        %v268 = vpack.c.bf16 %v239, %v238
        %v269 = vpack.c.bf16 %v241, %v240
        %v270 = vpack.c.bf16 %v243, %v242
        %v271 = vpack.c.bf16 %v245, %v244
        %v272 = vpack.c.bf16 %v247, %v246
        %v273 = vpack.c.bf16 %v249, %v248
        %v274 = vpack.c.bf16 %v251, %v250
        %v275 = vpack.c.bf16 %v253, %v252
        %v276 = vpack.c.bf16 %v255, %v254
        %v277 = vpack.c.bf16 %v257, %v256
        %v278 = vpack.c.bf16 %v259, %v258
        %v279 = vpack.c.bf16 %v261, %v260
        %v280 = vpack.c.bf16 %v263, %v262
        %v281 = vpack.c.bf16 %v265, %v264
        %v282 = vld [vmem:[%s211] sm:$0xff]
        %v283 = vld [vmem:[%s211 + $0x8] sm:$0xff]
        %v284 = vld [vmem:[%s211 + $0x10] sm:$0xff]
        %v285 = vld [vmem:[%s211 + $0x18] sm:$0xff]
        %v286 = vld [vmem:[%s211 + $0x20] sm:$0xff]
        %v287 = vld [vmem:[%s211 + $0x28] sm:$0xff]
        %v288 = vld [vmem:[%s211 + $0x30] sm:$0xff]
        %v289 = vld [vmem:[%s211 + $0x38] sm:$0xff]
        %v290 = vld [vmem:[%s211 + $0x40] sm:$0xff]
        %v291 = vld [vmem:[%s211 + $0x48] sm:$0xff]
        %v292 = vld [vmem:[%s211 + $0x50] sm:$0xff]
        %v293 = vld [vmem:[%s211 + $0x58] sm:$0xff]
        %v294 = vld [vmem:[%s211 + $0x60] sm:$0xff]
        %v295 = vld [vmem:[%s211 + $0x68] sm:$0xff]
        %v296 = vld [vmem:[%s211 + $0x70] sm:$0xff]
        %v297 = vld [vmem:[%s211 + $0x78] sm:$0xff]
        %v298 = vld [vmem:[%s211 + $0x80] sm:$0xff]
        %v299 = vld [vmem:[%s211 + $0x88] sm:$0xff]
        %v300 = vld [vmem:[%s211 + $0x90] sm:$0xff]
        %v301 = vld [vmem:[%s211 + $0x98] sm:$0xff]
        %v302 = vld [vmem:[%s211 + $0xa0] sm:$0xff]
        %v303 = vld [vmem:[%s211 + $0xa8] sm:$0xff]
        %v304 = vld [vmem:[%s211 + $0xb0] sm:$0xff]
        %v305 = vld [vmem:[%s211 + $0xb8] sm:$0xff]
        %v306 = vpack.c.bf16 %v285, %v282
        %v307 = vpack.c.bf16 %v286, %v283
        %v308 = vpack.c.bf16 %v287, %v284
        %v309 = vpack.c.bf16 %v291, %v288
        %v310 = vpack.c.bf16 %v292, %v289
        %v311 = vpack.c.bf16 %v293, %v290
        %v312 = vpack.c.bf16 %v297, %v294
        %v313 = vpack.c.bf16 %v298, %v295
        %v314 = vpack.c.bf16 %v299, %v296
        %v315 = vpack.c.bf16 %v303, %v300
        %v316 = vpack.c.bf16 %v304, %v301
        %v317 = vpack.c.bf16 %v305, %v302
        %v318 = vld [vmem:[%s1] sm:$0xff]
        %v319 = vld [vmem:[%s1 + $0x8] sm:$0xff]
        %v320 = vld [vmem:[%s1 + $0x10] sm:$0xff]
        %v321 = vld [vmem:[%s1 + $0x18] sm:$0xff]
        %v322 = vld [vmem:[%s1 + $0x20] sm:$0xff]
        %v323 = vld [vmem:[%s1 + $0x28] sm:$0xff]
        %v324 = vld [vmem:[%s1 + $0x30] sm:$0xff]
        %v325 = vld [vmem:[%s1 + $0x38] sm:$0xff]
        %v326 = vld [vmem:[%s1 + $0x40] sm:$0xff]
        %v327 = vld [vmem:[%s1 + $0x48] sm:$0xff]
        %v328 = vld [vmem:[%s1 + $0x50] sm:$0xff]
        %v329 = vld [vmem:[%s1 + $0x58] sm:$0xff]
        %v330 = vld [vmem:[%s1 + $0x60] sm:$0xff]
        %v331 = vld [vmem:[%s1 + $0x68] sm:$0xff]
        %v332 = vld [vmem:[%s1 + $0x70] sm:$0xff]
        %v333 = vld [vmem:[%s1 + $0x78] sm:$0xff]
        %v334 = vld [vmem:[%s1 + $0x80] sm:$0xff]
        %v335 = vld [vmem:[%s1 + $0x88] sm:$0xff]
        %v336 = vld [vmem:[%s1 + $0x90] sm:$0xff]
        %v337 = vld [vmem:[%s1 + $0x98] sm:$0xff]
        %v338 = vld [vmem:[%s1 + $0xa0] sm:$0xff]
        %v339 = vld [vmem:[%s1 + $0xa8] sm:$0xff]
        %v340 = vld [vmem:[%s1 + $0xb0] sm:$0xff]
        %v341 = vld [vmem:[%s1 + $0xb8] sm:$0xff]
        %v342 = vld [vmem:[%s1 + $0xc0] sm:$0xff]
        %v343 = vld [vmem:[%s1 + $0xc8] sm:$0xff]
        %v344 = vld [vmem:[%s1 + $0xd0] sm:$0xff]
        %v345 = vld [vmem:[%s1 + $0xd8] sm:$0xff]
        %v346 = vld [vmem:[%s1 + $0xe0] sm:$0xff]
        %v347 = vld [vmem:[%s1 + $0xe8] sm:$0xff]
        %v348 = vld [vmem:[%s1 + $0xf0] sm:$0xff]
        %v349 = vld [vmem:[%s1 + $0xf8] sm:$0xff]
        %351 = vset.pattern.permute.xlu0 0
        %352 = vperm.xlu0 %351, %v318
        %v353 = vpop.permute.xlu0 %352
        %356 = vset.pattern.permute.xlu0 0
        %357 = vperm.xlu0 %356, %v319
        %v358 = vpop.permute.xlu0 %357
        %361 = vset.pattern.permute.xlu0 0
        %362 = vperm.xlu0 %361, %v320
        %v363 = vpop.permute.xlu0 %362
        %366 = vset.pattern.permute.xlu0 0
        %367 = vperm.xlu0 %366, %v321
        %v368 = vpop.permute.xlu0 %367
        %371 = vset.pattern.permute.xlu0 0
        %372 = vperm.xlu0 %371, %v322
        %v373 = vpop.permute.xlu0 %372
        %376 = vset.pattern.permute.xlu0 0
        %377 = vperm.xlu0 %376, %v323
        %v378 = vpop.permute.xlu0 %377
        %381 = vset.pattern.permute.xlu0 0
        %382 = vperm.xlu0 %381, %v324
        %v383 = vpop.permute.xlu0 %382
        %386 = vset.pattern.permute.xlu0 0
        %387 = vperm.xlu0 %386, %v325
        %v388 = vpop.permute.xlu0 %387
        %391 = vset.pattern.permute.xlu0 0
        %392 = vperm.xlu0 %391, %v326
        %v393 = vpop.permute.xlu0 %392
        %396 = vset.pattern.permute.xlu0 0
        %397 = vperm.xlu0 %396, %v327
        %v398 = vpop.permute.xlu0 %397
        %401 = vset.pattern.permute.xlu0 0
        %402 = vperm.xlu0 %401, %v328
        %v403 = vpop.permute.xlu0 %402
        %406 = vset.pattern.permute.xlu0 0
        %407 = vperm.xlu0 %406, %v329
        %v408 = vpop.permute.xlu0 %407
        %411 = vset.pattern.permute.xlu0 0
        %412 = vperm.xlu0 %411, %v330
        %v413 = vpop.permute.xlu0 %412
        %416 = vset.pattern.permute.xlu0 0
        %417 = vperm.xlu0 %416, %v331
        %v418 = vpop.permute.xlu0 %417
        %421 = vset.pattern.permute.xlu0 0
        %422 = vperm.xlu0 %421, %v332
        %v423 = vpop.permute.xlu0 %422
        %426 = vset.pattern.permute.xlu0 0
        %427 = vperm.xlu0 %426, %v333
        %v428 = vpop.permute.xlu0 %427
        %431 = vset.pattern.permute.xlu0 0
        %432 = vperm.xlu0 %431, %v334
        %v433 = vpop.permute.xlu0 %432
        %436 = vset.pattern.permute.xlu0 0
        %437 = vperm.xlu0 %436, %v335
        %v438 = vpop.permute.xlu0 %437
        %441 = vset.pattern.permute.xlu0 0
        %442 = vperm.xlu0 %441, %v336
        %v443 = vpop.permute.xlu0 %442
        %446 = vset.pattern.permute.xlu0 0
        %447 = vperm.xlu0 %446, %v337
        %v448 = vpop.permute.xlu0 %447
        %451 = vset.pattern.permute.xlu0 0
        %452 = vperm.xlu0 %451, %v338
        %v453 = vpop.permute.xlu0 %452
        %456 = vset.pattern.permute.xlu0 0
        %457 = vperm.xlu0 %456, %v339
        %v458 = vpop.permute.xlu0 %457
        %461 = vset.pattern.permute.xlu0 0
        %462 = vperm.xlu0 %461, %v340
        %v463 = vpop.permute.xlu0 %462
        %466 = vset.pattern.permute.xlu0 0
        %467 = vperm.xlu0 %466, %v341
        %v468 = vpop.permute.xlu0 %467
        %471 = vset.pattern.permute.xlu0 0
        %472 = vperm.xlu0 %471, %v342
        %v473 = vpop.permute.xlu0 %472
        %476 = vset.pattern.permute.xlu0 0
        %477 = vperm.xlu0 %476, %v343
        %v478 = vpop.permute.xlu0 %477
        %481 = vset.pattern.permute.xlu0 0
        %482 = vperm.xlu0 %481, %v344
        %v483 = vpop.permute.xlu0 %482
        %486 = vset.pattern.permute.xlu0 0
        %487 = vperm.xlu0 %486, %v345
        %v488 = vpop.permute.xlu0 %487
        %491 = vset.pattern.permute.xlu0 0
        %492 = vperm.xlu0 %491, %v346
        %v493 = vpop.permute.xlu0 %492
        %496 = vset.pattern.permute.xlu0 0
        %497 = vperm.xlu0 %496, %v347
        %v498 = vpop.permute.xlu0 %497
        %501 = vset.pattern.permute.xlu0 0
        %502 = vperm.xlu0 %501, %v348
        %v503 = vpop.permute.xlu0 %502
        %506 = vset.pattern.permute.xlu0 0
        %507 = vperm.xlu0 %506, %v349
        %v508 = vpop.permute.xlu0 %507
        %vm510 = vcmask 523264
        %v512 = vsel %vm510, %v266, 0
        %v515 = vsel %vm510, %v267, 0
        %v518 = vsel %vm510, %v268, 0
        %v521 = vsel %vm510, %v269, 0
        %v524 = vsel %vm510, %v270, 0
        %v527 = vsel %vm510, %v271, 0
        %v530 = vsel %vm510, %v272, 0
        %v533 = vsel %vm510, %v273, 0
        %v536 = vsel %vm510, %v274, 0
        %v539 = vsel %vm510, %v275, 0
        %v542 = vsel %vm510, %v276, 0
        %v545 = vsel %vm510, %v277, 0
        %v548 = vsel %vm510, %v278, 0
        %v551 = vsel %vm510, %v279, 0
        %v554 = vsel %vm510, %v280, 0
        %v557 = vsel %vm510, %v281, 0
        %559 = vmatprep.subr.bf16.mxu0 0
        %560 = vmatpush1.bf16.msra.mxu0 0
        %561 = vmatprep.subr.bf16.mxu0 0
        %562 = vmatpush1.bf16.msra.mxu0 0
        %563 = vmatprep.subr.bf16.mxu0 0
        %564 = vmatpush1.bf16.msra.mxu0 0
        %565 = vmatprep.subr.bf16.mxu0 0
        %566 = vmatpush1.bf16.msra.mxu0 0
        %567 = vmatprep.subr.bf16.mxu0 %v316
        %568 = vmatpush1.bf16.msra.mxu0 %v315
        %569 = vmatprep.subr.bf16.mxu0 %v313
        %570 = vmatpush1.bf16.msra.mxu0 %v312
        %571 = vmatprep.subr.bf16.mxu0 %v310
        %572 = vmatpush1.bf16.msra.mxu0 %v309
        %573 = vmatprep.subr.bf16.mxu0 %v307
        %574 = vmatpush1.bf16.msra.mxu0 %v306
        %575 = vmatprep.subr.bf16.mxu0 0
        %576 = vmatpush2.bf16.msra.mxu0 0
        %577 = vmatprep.subr.bf16.mxu0 0
        %578 = vmatpush2.bf16.msra.mxu0 0
        %579 = vmatprep.subr.bf16.mxu0 0
        %580 = vmatpush2.bf16.msra.mxu0 0
        %581 = vmatprep.subr.bf16.mxu0 0
        %582 = vmatpush2.bf16.msra.mxu0 0
        %583 = vmatprep.subr.bf16.mxu0 0
        %584 = vmatpush2.bf16.msra.mxu0 0
        %585 = vmatprep.subr.bf16.mxu0 0
        %586 = vmatpush2.bf16.msra.mxu0 0
        %587 = vmatprep.subr.bf16.mxu0 0
        %588 = vmatpush2.bf16.msra.mxu0 0
        %589 = vmatprep.subr.bf16.mxu0 0
        %590 = vmatpush2.bf16.msra.mxu0 0
        %591 = vmatprep.mubr.bf16.mxu0 0
        %592 = vmatmul.mubr.bf16.gmra.mxu0 %v512
        %v593 = vpop.f32.mrf.mxu0
        %v594 = vadd.f32 %v353, %v593
        %v595 = vpop.f32.mrf.mxu0
        %v596 = vadd.f32 %v353, %v595
        %v597 = vpop.f32.mrf.mxu0
        %v598 = vadd.f32 %v358, %v597
        %v599 = vpop.f32.mrf.mxu0
        %v600 = vadd.f32 %v358, %v599
        %601 = vmatprep.mubr.bf16.mxu0 0
        %602 = vmatmul.mubr.bf16.gmra.mxu0 %v515
        %v603 = vpop.f32.mrf.mxu0
        %v604 = vadd.f32 %v363, %v603
        %v605 = vpop.f32.mrf.mxu0
        %v606 = vadd.f32 %v363, %v605
        %v607 = vpop.f32.mrf.mxu0
        %v608 = vadd.f32 %v368, %v607
        %v609 = vpop.f32.mrf.mxu0
        %v610 = vadd.f32 %v368, %v609
        %611 = vmatprep.mubr.bf16.mxu0 0
        %612 = vmatmul.mubr.bf16.gmra.mxu0 %v518
        %v613 = vpop.f32.mrf.mxu0
        %v614 = vadd.f32 %v373, %v613
        %v615 = vpop.f32.mrf.mxu0
        %v616 = vadd.f32 %v373, %v615
        %v617 = vpop.f32.mrf.mxu0
        %v618 = vadd.f32 %v378, %v617
        %v619 = vpop.f32.mrf.mxu0
        %v620 = vadd.f32 %v378, %v619
        %621 = vmatprep.mubr.bf16.mxu0 0
        %622 = vmatmul.mubr.bf16.gmra.mxu0 %v521
        %v623 = vpop.f32.mrf.mxu0
        %v624 = vadd.f32 %v383, %v623
        %v625 = vpop.f32.mrf.mxu0
        %v626 = vadd.f32 %v383, %v625
        %v627 = vpop.f32.mrf.mxu0
        %v628 = vadd.f32 %v388, %v627
        %v629 = vpop.f32.mrf.mxu0
        %v630 = vadd.f32 %v388, %v629
        %631 = vmatprep.mubr.bf16.mxu0 0
        %632 = vmatmul.mubr.bf16.gmra.mxu0 %v524
        %v633 = vpop.f32.mrf.mxu0
        %v634 = vadd.f32 %v393, %v633
        %v635 = vpop.f32.mrf.mxu0
        %v636 = vadd.f32 %v393, %v635
        %v637 = vpop.f32.mrf.mxu0
        %v638 = vadd.f32 %v398, %v637
        %v639 = vpop.f32.mrf.mxu0
        %v640 = vadd.f32 %v398, %v639
        %641 = vmatprep.mubr.bf16.mxu0 0
        %642 = vmatmul.mubr.bf16.gmra.mxu0 %v527
        %v643 = vpop.f32.mrf.mxu0
        %v644 = vadd.f32 %v403, %v643
        %v645 = vpop.f32.mrf.mxu0
        %v646 = vadd.f32 %v403, %v645
        %v647 = vpop.f32.mrf.mxu0
        %v648 = vadd.f32 %v408, %v647
        %v649 = vpop.f32.mrf.mxu0
        %v650 = vadd.f32 %v408, %v649
        %651 = vmatprep.mubr.bf16.mxu0 0
        %652 = vmatmul.mubr.bf16.gmra.mxu0 %v530
        %v653 = vpop.f32.mrf.mxu0
        %v654 = vadd.f32 %v413, %v653
        %v655 = vpop.f32.mrf.mxu0
        %v656 = vadd.f32 %v413, %v655
        %v657 = vpop.f32.mrf.mxu0
        %v658 = vadd.f32 %v418, %v657
        %v659 = vpop.f32.mrf.mxu0
        %v660 = vadd.f32 %v418, %v659
        %661 = vmatprep.mubr.bf16.mxu0 0
        %662 = vmatmul.mubr.bf16.gmra.mxu0 %v533
        %v663 = vpop.f32.mrf.mxu0
        %v664 = vadd.f32 %v423, %v663
        %v665 = vpop.f32.mrf.mxu0
        %v666 = vadd.f32 %v423, %v665
        %v667 = vpop.f32.mrf.mxu0
        %v668 = vadd.f32 %v428, %v667
        %v669 = vpop.f32.mrf.mxu0
        %v670 = vadd.f32 %v428, %v669
        %671 = vmatprep.mubr.bf16.mxu0 0
        %672 = vmatmul.mubr.bf16.gmra.mxu0 %v536
        %v673 = vpop.f32.mrf.mxu0
        %v674 = vadd.f32 %v433, %v673
        %v675 = vpop.f32.mrf.mxu0
        %v676 = vadd.f32 %v433, %v675
        %v677 = vpop.f32.mrf.mxu0
        %v678 = vadd.f32 %v438, %v677
        %v679 = vpop.f32.mrf.mxu0
        %v680 = vadd.f32 %v438, %v679
        %681 = vmatprep.mubr.bf16.mxu0 0
        %682 = vmatmul.mubr.bf16.gmra.mxu0 %v539
        %v683 = vpop.f32.mrf.mxu0
        %v684 = vadd.f32 %v443, %v683
        %v685 = vpop.f32.mrf.mxu0
        %v686 = vadd.f32 %v443, %v685
        %v687 = vpop.f32.mrf.mxu0
        %v688 = vadd.f32 %v448, %v687
        %v689 = vpop.f32.mrf.mxu0
        %v690 = vadd.f32 %v448, %v689
        %691 = vmatprep.mubr.bf16.mxu0 0
        %692 = vmatmul.mubr.bf16.gmra.mxu0 %v542
        %v693 = vpop.f32.mrf.mxu0
        %v694 = vadd.f32 %v453, %v693
        %v695 = vpop.f32.mrf.mxu0
        %v696 = vadd.f32 %v453, %v695
        %v697 = vpop.f32.mrf.mxu0
        %v698 = vadd.f32 %v458, %v697
        %v699 = vpop.f32.mrf.mxu0
        %v700 = vadd.f32 %v458, %v699
        %701 = vmatprep.mubr.bf16.mxu0 0
        %702 = vmatmul.mubr.bf16.gmra.mxu0 %v545
        %v703 = vpop.f32.mrf.mxu0
        %v704 = vadd.f32 %v463, %v703
        %v705 = vpop.f32.mrf.mxu0
        %v706 = vadd.f32 %v463, %v705
        %v707 = vpop.f32.mrf.mxu0
        %v708 = vadd.f32 %v468, %v707
        %v709 = vpop.f32.mrf.mxu0
        %v710 = vadd.f32 %v468, %v709
        %711 = vmatprep.mubr.bf16.mxu0 0
        %712 = vmatmul.mubr.bf16.gmra.mxu0 %v548
        %v713 = vpop.f32.mrf.mxu0
        %v714 = vadd.f32 %v473, %v713
        %v715 = vpop.f32.mrf.mxu0
        %v716 = vadd.f32 %v473, %v715
        %v717 = vpop.f32.mrf.mxu0
        %v718 = vadd.f32 %v478, %v717
        %v719 = vpop.f32.mrf.mxu0
        %v720 = vadd.f32 %v478, %v719
        %721 = vmatprep.mubr.bf16.mxu0 0
        %722 = vmatmul.mubr.bf16.gmra.mxu0 %v551
        %v723 = vpop.f32.mrf.mxu0
        %v724 = vadd.f32 %v483, %v723
        %v725 = vpop.f32.mrf.mxu0
        %v726 = vadd.f32 %v483, %v725
        %v727 = vpop.f32.mrf.mxu0
        %v728 = vadd.f32 %v488, %v727
        %v729 = vpop.f32.mrf.mxu0
        %v730 = vadd.f32 %v488, %v729
        %731 = vmatprep.mubr.bf16.mxu0 0
        %732 = vmatmul.mubr.bf16.gmra.mxu0 %v554
        %v733 = vpop.f32.mrf.mxu0
        %v734 = vadd.f32 %v493, %v733
        %v735 = vpop.f32.mrf.mxu0
        %v736 = vadd.f32 %v493, %v735
        %v737 = vpop.f32.mrf.mxu0
        %v738 = vadd.f32 %v498, %v737
        %v739 = vpop.f32.mrf.mxu0
        %v740 = vadd.f32 %v498, %v739
        %741 = vmatprep.mubr.bf16.mxu0 0
        %742 = vmatmul.mubr.bf16.gmra.mxu0 %v557
        %v743 = vpop.f32.mrf.mxu0
        %v744 = vadd.f32 %v503, %v743
        %v745 = vpop.f32.mrf.mxu0
        %v746 = vadd.f32 %v503, %v745
        %v747 = vpop.f32.mrf.mxu0
        %v748 = vadd.f32 %v508, %v747
        %v749 = vpop.f32.mrf.mxu0
        %v750 = vadd.f32 %v508, %v749
        %751 = vdwg.mxu0
        %752 = vmatprep.subr.bf16.mxu0 0
        %753 = vmatpush1.bf16.msra.mxu0 0
        %754 = vmatprep.subr.bf16.mxu0 0
        %755 = vmatpush1.bf16.msra.mxu0 0
        %756 = vmatprep.subr.bf16.mxu0 0
        %757 = vmatpush1.bf16.msra.mxu0 0
        %758 = vmatprep.subr.bf16.mxu0 0
        %759 = vmatpush1.bf16.msra.mxu0 0
        %760 = vmatprep.subr.bf16.mxu0 0
        %761 = vmatpush1.bf16.msra.mxu0 %v317
        %762 = vmatprep.subr.bf16.mxu0 0
        %763 = vmatpush1.bf16.msra.mxu0 %v314
        %764 = vmatprep.subr.bf16.mxu0 0
        %765 = vmatpush1.bf16.msra.mxu0 %v311
        %766 = vmatprep.subr.bf16.mxu0 0
        %767 = vmatpush1.bf16.msra.mxu0 %v308
        %768 = vmatprep.subr.bf16.mxu0 0
        %769 = vmatpush2.bf16.msra.mxu0 0
        %770 = vmatprep.subr.bf16.mxu0 0
        %771 = vmatpush2.bf16.msra.mxu0 0
        %772 = vmatprep.subr.bf16.mxu0 0
        %773 = vmatpush2.bf16.msra.mxu0 0
        %774 = vmatprep.subr.bf16.mxu0 0
        %775 = vmatpush2.bf16.msra.mxu0 0
        %776 = vmatprep.subr.bf16.mxu0 0
        %777 = vmatpush2.bf16.msra.mxu0 0
        %778 = vmatprep.subr.bf16.mxu0 0
        %779 = vmatpush2.bf16.msra.mxu0 0
        %780 = vmatprep.subr.bf16.mxu0 0
        %781 = vmatpush2.bf16.msra.mxu0 0
        %782 = vmatprep.subr.bf16.mxu0 0
        %783 = vmatpush2.bf16.msra.mxu0 0
        %784 = vmatprep.mubr.bf16.mxu0 0
        %785 = vmatmul.mubr.bf16.gmra.mxu0 %v512
        %v786 = vpop.f32.mrf.mxu0
        %v787 = vadd.f32 %v353, %v786
        %v788 = vpop.f32.mrf.mxu0
        %v789 = vpop.f32.mrf.mxu0
        %v790 = vadd.f32 %v358, %v789
        %v791 = vpop.f32.mrf.mxu0
        %792 = vmatprep.mubr.bf16.mxu0 0
        %793 = vmatmul.mubr.bf16.gmra.mxu0 %v515
        %v794 = vpop.f32.mrf.mxu0
        %v795 = vadd.f32 %v363, %v794
        %v796 = vpop.f32.mrf.mxu0
        %v797 = vpop.f32.mrf.mxu0
        %v798 = vadd.f32 %v368, %v797
        %v799 = vpop.f32.mrf.mxu0
        %800 = vmatprep.mubr.bf16.mxu0 0
        %801 = vmatmul.mubr.bf16.gmra.mxu0 %v518
        %v802 = vpop.f32.mrf.mxu0
        %v803 = vadd.f32 %v373, %v802
        %v804 = vpop.f32.mrf.mxu0
        %v805 = vpop.f32.mrf.mxu0
        %v806 = vadd.f32 %v378, %v805
        %v807 = vpop.f32.mrf.mxu0
        %808 = vmatprep.mubr.bf16.mxu0 0
        %809 = vmatmul.mubr.bf16.gmra.mxu0 %v521
        %v810 = vpop.f32.mrf.mxu0
        %v811 = vadd.f32 %v383, %v810
        %v812 = vpop.f32.mrf.mxu0
        %v813 = vpop.f32.mrf.mxu0
        %v814 = vadd.f32 %v388, %v813
        %v815 = vpop.f32.mrf.mxu0
        %816 = vmatprep.mubr.bf16.mxu0 0
        %817 = vmatmul.mubr.bf16.gmra.mxu0 %v524
        %v818 = vpop.f32.mrf.mxu0
        %v819 = vadd.f32 %v393, %v818
        %v820 = vpop.f32.mrf.mxu0
        %v821 = vpop.f32.mrf.mxu0
        %v822 = vadd.f32 %v398, %v821
        %v823 = vpop.f32.mrf.mxu0
        %824 = vmatprep.mubr.bf16.mxu0 0
        %825 = vmatmul.mubr.bf16.gmra.mxu0 %v527
        %v826 = vpop.f32.mrf.mxu0
        %v827 = vadd.f32 %v403, %v826
        %v828 = vpop.f32.mrf.mxu0
        %v829 = vpop.f32.mrf.mxu0
        %v830 = vadd.f32 %v408, %v829
        %v831 = vpop.f32.mrf.mxu0
        %832 = vmatprep.mubr.bf16.mxu0 0
        %833 = vmatmul.mubr.bf16.gmra.mxu0 %v530
        %v834 = vpop.f32.mrf.mxu0
        %v835 = vadd.f32 %v413, %v834
        %v836 = vpop.f32.mrf.mxu0
        %v837 = vpop.f32.mrf.mxu0
        %v838 = vadd.f32 %v418, %v837
        %v839 = vpop.f32.mrf.mxu0
        %840 = vmatprep.mubr.bf16.mxu0 0
        %841 = vmatmul.mubr.bf16.gmra.mxu0 %v533
        %v842 = vpop.f32.mrf.mxu0
        %v843 = vadd.f32 %v423, %v842
        %v844 = vpop.f32.mrf.mxu0
        %v845 = vpop.f32.mrf.mxu0
        %v846 = vadd.f32 %v428, %v845
        %v847 = vpop.f32.mrf.mxu0
        %848 = vmatprep.mubr.bf16.mxu0 0
        %849 = vmatmul.mubr.bf16.gmra.mxu0 %v536
        %v850 = vpop.f32.mrf.mxu0
        %v851 = vadd.f32 %v433, %v850
        %v852 = vpop.f32.mrf.mxu0
        %v853 = vpop.f32.mrf.mxu0
        %v854 = vadd.f32 %v438, %v853
        %v855 = vpop.f32.mrf.mxu0
        %856 = vmatprep.mubr.bf16.mxu0 0
        %857 = vmatmul.mubr.bf16.gmra.mxu0 %v539
        %v858 = vpop.f32.mrf.mxu0
        %v859 = vadd.f32 %v443, %v858
        %v860 = vpop.f32.mrf.mxu0
        %v861 = vpop.f32.mrf.mxu0
        %v862 = vadd.f32 %v448, %v861
        %v863 = vpop.f32.mrf.mxu0
        %864 = vmatprep.mubr.bf16.mxu0 0
        %865 = vmatmul.mubr.bf16.gmra.mxu0 %v542
        %v866 = vpop.f32.mrf.mxu0
        %v867 = vadd.f32 %v453, %v866
        %v868 = vpop.f32.mrf.mxu0
        %v869 = vpop.f32.mrf.mxu0
        %v870 = vadd.f32 %v458, %v869
        %v871 = vpop.f32.mrf.mxu0
        %872 = vmatprep.mubr.bf16.mxu0 0
        %873 = vmatmul.mubr.bf16.gmra.mxu0 %v545
        %v874 = vpop.f32.mrf.mxu0
        %v875 = vadd.f32 %v463, %v874
        %v876 = vpop.f32.mrf.mxu0
        %v877 = vpop.f32.mrf.mxu0
        %v878 = vadd.f32 %v468, %v877
        %v879 = vpop.f32.mrf.mxu0
        %880 = vmatprep.mubr.bf16.mxu0 0
        %881 = vmatmul.mubr.bf16.gmra.mxu0 %v548
        %v882 = vpop.f32.mrf.mxu0
        %v883 = vadd.f32 %v473, %v882
        %v884 = vpop.f32.mrf.mxu0
        %v885 = vpop.f32.mrf.mxu0
        %v886 = vadd.f32 %v478, %v885
        %v887 = vpop.f32.mrf.mxu0
        %888 = vmatprep.mubr.bf16.mxu0 0
        %889 = vmatmul.mubr.bf16.gmra.mxu0 %v551
        %v890 = vpop.f32.mrf.mxu0
        %v891 = vadd.f32 %v483, %v890
        %v892 = vpop.f32.mrf.mxu0
        %v893 = vpop.f32.mrf.mxu0
        %v894 = vadd.f32 %v488, %v893
        %v895 = vpop.f32.mrf.mxu0
        %896 = vmatprep.mubr.bf16.mxu0 0
        %897 = vmatmul.mubr.bf16.gmra.mxu0 %v554
        %v898 = vpop.f32.mrf.mxu0
        %v899 = vadd.f32 %v493, %v898
        %v900 = vpop.f32.mrf.mxu0
        %v901 = vpop.f32.mrf.mxu0
        %v902 = vadd.f32 %v498, %v901
        %v903 = vpop.f32.mrf.mxu0
        %904 = vmatprep.mubr.bf16.mxu0 0
        %905 = vmatmul.mubr.bf16.gmra.mxu0 %v557
        %v906 = vpop.f32.mrf.mxu0
        %v907 = vadd.f32 %v503, %v906
        %v908 = vpop.f32.mrf.mxu0
        %v909 = vpop.f32.mrf.mxu0
        %v910 = vadd.f32 %v508, %v909
        %v911 = vpop.f32.mrf.mxu0
        %912 = vdwg.mxu0
        %v913 = vmax.f32 %v594, 0.0
        %v914 = vmax.f32 %v596, 0.0
        %v915 = vmax.f32 %v787, 0.0
        %v916 = vmax.f32 %v598, 0.0
        %v917 = vmax.f32 %v600, 0.0
        %v918 = vmax.f32 %v790, 0.0
        %v919 = vmax.f32 %v604, 0.0
        %v920 = vmax.f32 %v606, 0.0
        %v921 = vmax.f32 %v795, 0.0
        %v922 = vmax.f32 %v608, 0.0
        %v923 = vmax.f32 %v610, 0.0
        %v924 = vmax.f32 %v798, 0.0
        %v925 = vmax.f32 %v614, 0.0
        %v926 = vmax.f32 %v616, 0.0
        %v927 = vmax.f32 %v803, 0.0
        %v928 = vmax.f32 %v618, 0.0
        %v929 = vmax.f32 %v620, 0.0
        %v930 = vmax.f32 %v806, 0.0
        %v931 = vmax.f32 %v624, 0.0
        %v932 = vmax.f32 %v626, 0.0
        %v933 = vmax.f32 %v811, 0.0
        %v934 = vmax.f32 %v628, 0.0
        %v935 = vmax.f32 %v630, 0.0
        %v936 = vmax.f32 %v814, 0.0
        %v937 = vmax.f32 %v634, 0.0
        %v938 = vmax.f32 %v636, 0.0
        %v939 = vmax.f32 %v819, 0.0
        %v940 = vmax.f32 %v638, 0.0
        %v941 = vmax.f32 %v640, 0.0
        %v942 = vmax.f32 %v822, 0.0
        %v943 = vmax.f32 %v644, 0.0
        %v944 = vmax.f32 %v646, 0.0
        %v945 = vmax.f32 %v827, 0.0
        %v946 = vmax.f32 %v648, 0.0
        %v947 = vmax.f32 %v650, 0.0
        %v948 = vmax.f32 %v830, 0.0
        %v949 = vmax.f32 %v654, 0.0
        %v950 = vmax.f32 %v656, 0.0
        %v951 = vmax.f32 %v835, 0.0
        %v952 = vmax.f32 %v658, 0.0
        %v953 = vmax.f32 %v660, 0.0
        %v954 = vmax.f32 %v838, 0.0
        %v955 = vmax.f32 %v664, 0.0
        %v956 = vmax.f32 %v666, 0.0
        %v957 = vmax.f32 %v843, 0.0
        %v958 = vmax.f32 %v668, 0.0
        %v959 = vmax.f32 %v670, 0.0
        %v960 = vmax.f32 %v846, 0.0
        %v961 = vmax.f32 %v674, 0.0
        %v962 = vmax.f32 %v676, 0.0
        %v963 = vmax.f32 %v851, 0.0
        %v964 = vmax.f32 %v678, 0.0
        %v965 = vmax.f32 %v680, 0.0
        %v966 = vmax.f32 %v854, 0.0
        %v967 = vmax.f32 %v684, 0.0
        %v968 = vmax.f32 %v686, 0.0
        %v969 = vmax.f32 %v859, 0.0
        %v970 = vmax.f32 %v688, 0.0
        %v971 = vmax.f32 %v690, 0.0
        %v972 = vmax.f32 %v862, 0.0
        %v973 = vmax.f32 %v694, 0.0
        %v974 = vmax.f32 %v696, 0.0
        %v975 = vmax.f32 %v867, 0.0
        %v976 = vmax.f32 %v698, 0.0
        %v977 = vmax.f32 %v700, 0.0
        %v978 = vmax.f32 %v870, 0.0
        %v979 = vmax.f32 %v704, 0.0
        %v980 = vmax.f32 %v706, 0.0
        %v981 = vmax.f32 %v875, 0.0
        %v982 = vmax.f32 %v708, 0.0
        %v983 = vmax.f32 %v710, 0.0
        %v984 = vmax.f32 %v878, 0.0
        %v985 = vmax.f32 %v714, 0.0
        %v986 = vmax.f32 %v716, 0.0
        %v987 = vmax.f32 %v883, 0.0
        %v988 = vmax.f32 %v718, 0.0
        %v989 = vmax.f32 %v720, 0.0
        %v990 = vmax.f32 %v886, 0.0
        %v991 = vmax.f32 %v724, 0.0
        %v992 = vmax.f32 %v726, 0.0
        %v993 = vmax.f32 %v891, 0.0
        %v994 = vmax.f32 %v728, 0.0
        %v995 = vmax.f32 %v730, 0.0
        %v996 = vmax.f32 %v894, 0.0
        %v997 = vmax.f32 %v734, 0.0
        %v998 = vmax.f32 %v736, 0.0
        %v999 = vmax.f32 %v899, 0.0
        %v1000 = vmax.f32 %v738, 0.0
        %v1001 = vmax.f32 %v740, 0.0
        %v1002 = vmax.f32 %v902, 0.0
        %v1003 = vmax.f32 %v744, 0.0
        %v1004 = vmax.f32 %v746, 0.0
        %v1005 = vmax.f32 %v907, 0.0
        %v1006 = vmax.f32 %v748, 0.0
        %v1007 = vmax.f32 %v750, 0.0
        %v1008 = vmax.f32 %v910, 0.0
        %1009 = vst [vmem:[%s230] sm:$0xff] %v913
        %1010 = vst [vmem:[%s230 + $0x8] sm:$0xff] %v914
        %1011 = vst [vmem:[%s230 + $0x10] sm:$0xff] %v915
        %1012 = vst [vmem:[%s230 + $0x18] sm:$0xff] %v916
        %1013 = vst [vmem:[%s230 + $0x20] sm:$0xff] %v917
        %1014 = vst [vmem:[%s230 + $0x28] sm:$0xff] %v918
        %1015 = vst [vmem:[%s230 + $0x30] sm:$0xff] %v919
        %1016 = vst [vmem:[%s230 + $0x38] sm:$0xff] %v920
        %1017 = vst [vmem:[%s230 + $0x40] sm:$0xff] %v921
        %1018 = vst [vmem:[%s230 + $0x48] sm:$0xff] %v922
        %1019 = vst [vmem:[%s230 + $0x50] sm:$0xff] %v923
        %1020 = vst [vmem:[%s230 + $0x58] sm:$0xff] %v924
        %1021 = vst [vmem:[%s230 + $0x60] sm:$0xff] %v925
        %1022 = vst [vmem:[%s230 + $0x68] sm:$0xff] %v926
        %1023 = vst [vmem:[%s230 + $0x70] sm:$0xff] %v927
        %1024 = vst [vmem:[%s230 + $0x78] sm:$0xff] %v928
        %1025 = vst [vmem:[%s230 + $0x80] sm:$0xff] %v929
        %1026 = vst [vmem:[%s230 + $0x88] sm:$0xff] %v930
        %1027 = vst [vmem:[%s230 + $0x90] sm:$0xff] %v931
        %1028 = vst [vmem:[%s230 + $0x98] sm:$0xff] %v932
        %1029 = vst [vmem:[%s230 + $0xa0] sm:$0xff] %v933
        %1030 = vst [vmem:[%s230 + $0xa8] sm:$0xff] %v934
        %1031 = vst [vmem:[%s230 + $0xb0] sm:$0xff] %v935
        %1032 = vst [vmem:[%s230 + $0xb8] sm:$0xff] %v936
        %1033 = vst [vmem:[%s230 + $0xc0] sm:$0xff] %v937
        %1034 = vst [vmem:[%s230 + $0xc8] sm:$0xff] %v938
        %1035 = vst [vmem:[%s230 + $0xd0] sm:$0xff] %v939
        %1036 = vst [vmem:[%s230 + $0xd8] sm:$0xff] %v940
        %1037 = vst [vmem:[%s230 + $0xe0] sm:$0xff] %v941
        %1038 = vst [vmem:[%s230 + $0xe8] sm:$0xff] %v942
        %1039 = vst [vmem:[%s230 + $0xf0] sm:$0xff] %v943
        %1040 = vst [vmem:[%s230 + $0xf8] sm:$0xff] %v944
        %1041 = vst [vmem:[%s230 + $0x100] sm:$0xff] %v945
        %1042 = vst [vmem:[%s230 + $0x108] sm:$0xff] %v946
        %1043 = vst [vmem:[%s230 + $0x110] sm:$0xff] %v947
        %1044 = vst [vmem:[%s230 + $0x118] sm:$0xff] %v948
        %1045 = vst [vmem:[%s230 + $0x120] sm:$0xff] %v949
        %1046 = vst [vmem:[%s230 + $0x128] sm:$0xff] %v950
        %1047 = vst [vmem:[%s230 + $0x130] sm:$0xff] %v951
        %1048 = vst [vmem:[%s230 + $0x138] sm:$0xff] %v952
        %1049 = vst [vmem:[%s230 + $0x140] sm:$0xff] %v953
        %1050 = vst [vmem:[%s230 + $0x148] sm:$0xff] %v954
        %1051 = vst [vmem:[%s230 + $0x150] sm:$0xff] %v955
        %1052 = vst [vmem:[%s230 + $0x158] sm:$0xff] %v956
        %1053 = vst [vmem:[%s230 + $0x160] sm:$0xff] %v957
        %1054 = vst [vmem:[%s230 + $0x168] sm:$0xff] %v958
        %1055 = vst [vmem:[%s230 + $0x170] sm:$0xff] %v959
        %1056 = vst [vmem:[%s230 + $0x178] sm:$0xff] %v960
        %1057 = vst [vmem:[%s230 + $0x180] sm:$0xff] %v961
        %1058 = vst [vmem:[%s230 + $0x188] sm:$0xff] %v962
        %1059 = vst [vmem:[%s230 + $0x190] sm:$0xff] %v963
        %1060 = vst [vmem:[%s230 + $0x198] sm:$0xff] %v964
        %1061 = vst [vmem:[%s230 + $0x1a0] sm:$0xff] %v965
        %1062 = vst [vmem:[%s230 + $0x1a8] sm:$0xff] %v966
        %1063 = vst [vmem:[%s230 + $0x1b0] sm:$0xff] %v967
        %1064 = vst [vmem:[%s230 + $0x1b8] sm:$0xff] %v968
        %1065 = vst [vmem:[%s230 + $0x1c0] sm:$0xff] %v969
        %1066 = vst [vmem:[%s230 + $0x1c8] sm:$0xff] %v970
        %1067 = vst [vmem:[%s230 + $0x1d0] sm:$0xff] %v971
        %1068 = vst [vmem:[%s230 + $0x1d8] sm:$0xff] %v972
        %1069 = vst [vmem:[%s230 + $0x1e0] sm:$0xff] %v973
        %1070 = vst [vmem:[%s230 + $0x1e8] sm:$0xff] %v974
        %1071 = vst [vmem:[%s230 + $0x1f0] sm:$0xff] %v975
        %1072 = vst [vmem:[%s230 + $0x1f8] sm:$0xff] %v976
        %1073 = vst [vmem:[%s230 + $0x200] sm:$0xff] %v977
        %1074 = vst [vmem:[%s230 + $0x208] sm:$0xff] %v978
        %1075 = vst [vmem:[%s230 + $0x210] sm:$0xff] %v979
        %1076 = vst [vmem:[%s230 + $0x218] sm:$0xff] %v980
        %1077 = vst [vmem:[%s230 + $0x220] sm:$0xff] %v981
        %1078 = vst [vmem:[%s230 + $0x228] sm:$0xff] %v982
        %1079 = vst [vmem:[%s230 + $0x230] sm:$0xff] %v983
        %1080 = vst [vmem:[%s230 + $0x238] sm:$0xff] %v984
        %1081 = vst [vmem:[%s230 + $0x240] sm:$0xff] %v985
        %1082 = vst [vmem:[%s230 + $0x248] sm:$0xff] %v986
        %1083 = vst [vmem:[%s230 + $0x250] sm:$0xff] %v987
        %1084 = vst [vmem:[%s230 + $0x258] sm:$0xff] %v988
        %1085 = vst [vmem:[%s230 + $0x260] sm:$0xff] %v989
        %1086 = vst [vmem:[%s230 + $0x268] sm:$0xff] %v990
        %1087 = vst [vmem:[%s230 + $0x270] sm:$0xff] %v991
        %1088 = vst [vmem:[%s230 + $0x278] sm:$0xff] %v992
        %1089 = vst [vmem:[%s230 + $0x280] sm:$0xff] %v993
        %1090 = vst [vmem:[%s230 + $0x288] sm:$0xff] %v994
        %1091 = vst [vmem:[%s230 + $0x290] sm:$0xff] %v995
        %1092 = vst [vmem:[%s230 + $0x298] sm:$0xff] %v996
        %1093 = vst [vmem:[%s230 + $0x2a0] sm:$0xff] %v997
        %1094 = vst [vmem:[%s230 + $0x2a8] sm:$0xff] %v998
        %1095 = vst [vmem:[%s230 + $0x2b0] sm:$0xff] %v999
        %1096 = vst [vmem:[%s230 + $0x2b8] sm:$0xff] %v1000
        %1097 = vst [vmem:[%s230 + $0x2c0] sm:$0xff] %v1001
        %1098 = vst [vmem:[%s230 + $0x2c8] sm:$0xff] %v1002
        %1099 = vst [vmem:[%s230 + $0x2d0] sm:$0xff] %v1003
        %1100 = vst [vmem:[%s230 + $0x2d8] sm:$0xff] %v1004
        %1101 = vst [vmem:[%s230 + $0x2e0] sm:$0xff] %v1005
        %1102 = vst [vmem:[%s230 + $0x2e8] sm:$0xff] %v1006
        %1103 = vst [vmem:[%s230 + $0x2f0] sm:$0xff] %v1007
        %1104 = vst [vmem:[%s230 + $0x2f8] sm:$0xff] %v1008
        %s1105 = sand.u32 %s90, 1
        %s1106 = sand.u32 %s90, 1
        %s1107 = smul.addr %s1106, 768
        %s1108 = scalar_lea.vmem [#allocation3], %s1107
        // Predicated region
        $region56: #{tpu_custom_call.1} parent=50 // pred_check
          %p1109 = pneg %p100
        $region57: #{tpu_custom_call.1} parent=50 // pred_check_branch
          %1111 = sbr.rel (%p1109) target = $region59
        $region58: #{tpu_custom_call.1} parent=50 // pred_region
          %s1112 = smul.u32 3, %s14
          %s1113 = smul.addr %s1112, 8
          %s1114 = scalar_lea.vmem %s3, %s1113
          // Predicated region
          $region60: #{tpu_custom_call.1} parent=58 // pred_check
            _
          $region61: #{tpu_custom_call.1} parent=58 // pred_check_branch
            %1116 = sbr.rel (0) target = $region63
          $region62: #{tpu_custom_call.1} parent=58 // pred_region
            // Predicated region
            $region64: #{tpu_custom_call.1} parent=62 // pred_check
              _
            $region65: #{tpu_custom_call.1} parent=62 // pred_check_branch
              %1118 = sbr.rel (0) target = $region67
            $region66: #{tpu_custom_call.1} parent=62 // pred_region
              loop: start=0, step=1, limit=1
              $region68: #{tpu_custom_call.1} parent=66 // loop_pre_header
                _
              $region69: #{tpu_custom_call.1} parent=66 // loop_header
                %s1120 = sphi 0, %s1124
                %p1121 = scmp.ge.s32.totalorder %s1120, 1
                %s1125 = sphi %s1108, %s1108
                %s1126 = sphi %s1114, %s1114
              $region70: #{tpu_custom_call.1} parent=66 // loop_header_branch
                %1123 = sbr.rel (%p1121) target = $region74
              $region71: #{tpu_custom_call.1} parent=66 // loop_body
                %v1127 = vld [vmem:[%s1125] sm:$0xff]
                %1128 = vst [vmem:[%s1126] sm:$0xff] %v1127
                %v1129 = vld [vmem:[%s1125 + $0x8] sm:$0xff]
                %1130 = vst [vmem:[%s1126 + $0x8] sm:$0xff] %v1129
                %v1131 = vld [vmem:[%s1125 + $0x10] sm:$0xff]
                %1132 = vst [vmem:[%s1126 + $0x10] sm:$0xff] %v1131
                %v1133 = vld [vmem:[%s1125 + $0x18] sm:$0xff]
                %1134 = vst [vmem:[%s1126 + $0x30] sm:$0xff] %v1133
                %v1135 = vld [vmem:[%s1125 + $0x20] sm:$0xff]
                %1136 = vst [vmem:[%s1126 + $0x38] sm:$0xff] %v1135
                %v1137 = vld [vmem:[%s1125 + $0x28] sm:$0xff]
                %1138 = vst [vmem:[%s1126 + $0x40] sm:$0xff] %v1137
                %v1139 = vld [vmem:[%s1125 + $0x30] sm:$0xff]
                %1140 = vst [vmem:[%s1126 + $0x60] sm:$0xff] %v1139
                %v1141 = vld [vmem:[%s1125 + $0x38] sm:$0xff]
                %1142 = vst [vmem:[%s1126 + $0x68] sm:$0xff] %v1141
                %v1143 = vld [vmem:[%s1125 + $0x40] sm:$0xff]
                %1144 = vst [vmem:[%s1126 + $0x70] sm:$0xff] %v1143
                %v1145 = vld [vmem:[%s1125 + $0x48] sm:$0xff]
                %1146 = vst [vmem:[%s1126 + $0x90] sm:$0xff] %v1145
                %v1147 = vld [vmem:[%s1125 + $0x50] sm:$0xff]
                %1148 = vst [vmem:[%s1126 + $0x98] sm:$0xff] %v1147
                %v1149 = vld [vmem:[%s1125 + $0x58] sm:$0xff]
                %1150 = vst [vmem:[%s1126 + $0xa0] sm:$0xff] %v1149
                %v1151 = vld [vmem:[%s1125 + $0x60] sm:$0xff]
                %1152 = vst [vmem:[%s1126 + $0xc0] sm:$0xff] %v1151
                %v1153 = vld [vmem:[%s1125 + $0x68] sm:$0xff]
                %1154 = vst [vmem:[%s1126 + $0xc8] sm:$0xff] %v1153
                %v1155 = vld [vmem:[%s1125 + $0x70] sm:$0xff]
                %1156 = vst [vmem:[%s1126 + $0xd0] sm:$0xff] %v1155
                %v1157 = vld [vmem:[%s1125 + $0x78] sm:$0xff]
                %1158 = vst [vmem:[%s1126 + $0xf0] sm:$0xff] %v1157
                %v1159 = vld [vmem:[%s1125 + $0x80] sm:$0xff]
                %1160 = vst [vmem:[%s1126 + $0xf8] sm:$0xff] %v1159
                %v1161 = vld [vmem:[%s1125 + $0x88] sm:$0xff]
                %1162 = vst [vmem:[%s1126 + $0x100] sm:$0xff] %v1161
                %v1163 = vld [vmem:[%s1125 + $0x90] sm:$0xff]
                %1164 = vst [vmem:[%s1126 + $0x120] sm:$0xff] %v1163
                %v1165 = vld [vmem:[%s1125 + $0x98] sm:$0xff]
                %1166 = vst [vmem:[%s1126 + $0x128] sm:$0xff] %v1165
                %v1167 = vld [vmem:[%s1125 + $0xa0] sm:$0xff]
                %1168 = vst [vmem:[%s1126 + $0x130] sm:$0xff] %v1167
                %v1169 = vld [vmem:[%s1125 + $0xa8] sm:$0xff]
                %1170 = vst [vmem:[%s1126 + $0x150] sm:$0xff] %v1169
                %v1171 = vld [vmem:[%s1125 + $0xb0] sm:$0xff]
                %1172 = vst [vmem:[%s1126 + $0x158] sm:$0xff] %v1171
                %v1173 = vld [vmem:[%s1125 + $0xb8] sm:$0xff]
                %1174 = vst [vmem:[%s1126 + $0x160] sm:$0xff] %v1173
                %v1175 = vld [vmem:[%s1125 + $0xc0] sm:$0xff]
                %1176 = vst [vmem:[%s1126 + $0x180] sm:$0xff] %v1175
                %v1177 = vld [vmem:[%s1125 + $0xc8] sm:$0xff]
                %1178 = vst [vmem:[%s1126 + $0x188] sm:$0xff] %v1177
                %v1179 = vld [vmem:[%s1125 + $0xd0] sm:$0xff]
                %1180 = vst [vmem:[%s1126 + $0x190] sm:$0xff] %v1179
                %v1181 = vld [vmem:[%s1125 + $0xd8] sm:$0xff]
                %1182 = vst [vmem:[%s1126 + $0x1b0] sm:$0xff] %v1181
                %v1183 = vld [vmem:[%s1125 + $0xe0] sm:$0xff]
                %1184 = vst [vmem:[%s1126 + $0x1b8] sm:$0xff] %v1183
                %v1185 = vld [vmem:[%s1125 + $0xe8] sm:$0xff]
                %1186 = vst [vmem:[%s1126 + $0x1c0] sm:$0xff] %v1185
                %v1187 = vld [vmem:[%s1125 + $0xf0] sm:$0xff]
                %1188 = vst [vmem:[%s1126 + $0x1e0] sm:$0xff] %v1187
                %v1189 = vld [vmem:[%s1125 + $0xf8] sm:$0xff]
                %1190 = vst [vmem:[%s1126 + $0x1e8] sm:$0xff] %v1189
                %v1191 = vld [vmem:[%s1125 + $0x100] sm:$0xff]
                %1192 = vst [vmem:[%s1126 + $0x1f0] sm:$0xff] %v1191
                %v1193 = vld [vmem:[%s1125 + $0x108] sm:$0xff]
                %1194 = vst [vmem:[%s1126 + $0x210] sm:$0xff] %v1193
                %v1195 = vld [vmem:[%s1125 + $0x110] sm:$0xff]
                %1196 = vst [vmem:[%s1126 + $0x218] sm:$0xff] %v1195
                %v1197 = vld [vmem:[%s1125 + $0x118] sm:$0xff]
                %1198 = vst [vmem:[%s1126 + $0x220] sm:$0xff] %v1197
                %v1199 = vld [vmem:[%s1125 + $0x120] sm:$0xff]
                %1200 = vst [vmem:[%s1126 + $0x240] sm:$0xff] %v1199
                %v1201 = vld [vmem:[%s1125 + $0x128] sm:$0xff]
                %1202 = vst [vmem:[%s1126 + $0x248] sm:$0xff] %v1201
                %v1203 = vld [vmem:[%s1125 + $0x130] sm:$0xff]
                %1204 = vst [vmem:[%s1126 + $0x250] sm:$0xff] %v1203
                %v1205 = vld [vmem:[%s1125 + $0x138] sm:$0xff]
                %1206 = vst [vmem:[%s1126 + $0x270] sm:$0xff] %v1205
                %v1207 = vld [vmem:[%s1125 + $0x140] sm:$0xff]
                %1208 = vst [vmem:[%s1126 + $0x278] sm:$0xff] %v1207
                %v1209 = vld [vmem:[%s1125 + $0x148] sm:$0xff]
                %1210 = vst [vmem:[%s1126 + $0x280] sm:$0xff] %v1209
                %v1211 = vld [vmem:[%s1125 + $0x150] sm:$0xff]
                %1212 = vst [vmem:[%s1126 + $0x2a0] sm:$0xff] %v1211
                %v1213 = vld [vmem:[%s1125 + $0x158] sm:$0xff]
                %1214 = vst [vmem:[%s1126 + $0x2a8] sm:$0xff] %v1213
                %v1215 = vld [vmem:[%s1125 + $0x160] sm:$0xff]
                %1216 = vst [vmem:[%s1126 + $0x2b0] sm:$0xff] %v1215
                %v1217 = vld [vmem:[%s1125 + $0x168] sm:$0xff]
                %1218 = vst [vmem:[%s1126 + $0x2d0] sm:$0xff] %v1217
                %v1219 = vld [vmem:[%s1125 + $0x170] sm:$0xff]
                %1220 = vst [vmem:[%s1126 + $0x2d8] sm:$0xff] %v1219
                %v1221 = vld [vmem:[%s1125 + $0x178] sm:$0xff]
                %1222 = vst [vmem:[%s1126 + $0x2e0] sm:$0xff] %v1221
                %v1223 = vld [vmem:[%s1125 + $0x180] sm:$0xff]
                %1224 = vst [vmem:[%s1126 + $0x300] sm:$0xff] %v1223
                %v1225 = vld [vmem:[%s1125 + $0x188] sm:$0xff]
                %1226 = vst [vmem:[%s1126 + $0x308] sm:$0xff] %v1225
                %v1227 = vld [vmem:[%s1125 + $0x190] sm:$0xff]
                %1228 = vst [vmem:[%s1126 + $0x310] sm:$0xff] %v1227
                %v1229 = vld [vmem:[%s1125 + $0x198] sm:$0xff]
                %1230 = vst [vmem:[%s1126 + $0x330] sm:$0xff] %v1229
                %v1231 = vld [vmem:[%s1125 + $0x1a0] sm:$0xff]
                %1232 = vst [vmem:[%s1126 + $0x338] sm:$0xff] %v1231
                %v1233 = vld [vmem:[%s1125 + $0x1a8] sm:$0xff]
                %1234 = vst [vmem:[%s1126 + $0x340] sm:$0xff] %v1233
                %v1235 = vld [vmem:[%s1125 + $0x1b0] sm:$0xff]
                %1236 = vst [vmem:[%s1126 + $0x360] sm:$0xff] %v1235
                %v1237 = vld [vmem:[%s1125 + $0x1b8] sm:$0xff]
                %1238 = vst [vmem:[%s1126 + $0x368] sm:$0xff] %v1237
                %v1239 = vld [vmem:[%s1125 + $0x1c0] sm:$0xff]
                %1240 = vst [vmem:[%s1126 + $0x370] sm:$0xff] %v1239
                %v1241 = vld [vmem:[%s1125 + $0x1c8] sm:$0xff]
                %1242 = vst [vmem:[%s1126 + $0x390] sm:$0xff] %v1241
                %v1243 = vld [vmem:[%s1125 + $0x1d0] sm:$0xff]
                %1244 = vst [vmem:[%s1126 + $0x398] sm:$0xff] %v1243
                %v1245 = vld [vmem:[%s1125 + $0x1d8] sm:$0xff]
                %1246 = vst [vmem:[%s1126 + $0x3a0] sm:$0xff] %v1245
                %v1247 = vld [vmem:[%s1125 + $0x1e0] sm:$0xff]
                %1248 = vst [vmem:[%s1126 + $0x3c0] sm:$0xff] %v1247
                %v1249 = vld [vmem:[%s1125 + $0x1e8] sm:$0xff]
                %1250 = vst [vmem:[%s1126 + $0x3c8] sm:$0xff] %v1249
                %v1251 = vld [vmem:[%s1125 + $0x1f0] sm:$0xff]
                %1252 = vst [vmem:[%s1126 + $0x3d0] sm:$0xff] %v1251
                %v1253 = vld [vmem:[%s1125 + $0x1f8] sm:$0xff]
                %1254 = vst [vmem:[%s1126 + $0x3f0] sm:$0xff] %v1253
                %v1255 = vld [vmem:[%s1125 + $0x200] sm:$0xff]
                %1256 = vst [vmem:[%s1126 + $0x3f8] sm:$0xff] %v1255
                %v1257 = vld [vmem:[%s1125 + $0x208] sm:$0xff]
                %1258 = vst [vmem:[%s1126 + $0x400] sm:$0xff] %v1257
                %v1259 = vld [vmem:[%s1125 + $0x210] sm:$0xff]
                %1260 = vst [vmem:[%s1126 + $0x420] sm:$0xff] %v1259
                %v1261 = vld [vmem:[%s1125 + $0x218] sm:$0xff]
                %1262 = vst [vmem:[%s1126 + $0x428] sm:$0xff] %v1261
                %v1263 = vld [vmem:[%s1125 + $0x220] sm:$0xff]
                %1264 = vst [vmem:[%s1126 + $0x430] sm:$0xff] %v1263
                %v1265 = vld [vmem:[%s1125 + $0x228] sm:$0xff]
                %1266 = vst [vmem:[%s1126 + $0x450] sm:$0xff] %v1265
                %v1267 = vld [vmem:[%s1125 + $0x230] sm:$0xff]
                %1268 = vst [vmem:[%s1126 + $0x458] sm:$0xff] %v1267
                %v1269 = vld [vmem:[%s1125 + $0x238] sm:$0xff]
                %1270 = vst [vmem:[%s1126 + $0x460] sm:$0xff] %v1269
                %v1271 = vld [vmem:[%s1125 + $0x240] sm:$0xff]
                %1272 = vst [vmem:[%s1126 + $0x480] sm:$0xff] %v1271
                %v1273 = vld [vmem:[%s1125 + $0x248] sm:$0xff]
                %1274 = vst [vmem:[%s1126 + $0x488] sm:$0xff] %v1273
                %v1275 = vld [vmem:[%s1125 + $0x250] sm:$0xff]
                %1276 = vst [vmem:[%s1126 + $0x490] sm:$0xff] %v1275
                %v1277 = vld [vmem:[%s1125 + $0x258] sm:$0xff]
                %1278 = vst [vmem:[%s1126 + $0x4b0] sm:$0xff] %v1277
                %v1279 = vld [vmem:[%s1125 + $0x260] sm:$0xff]
                %1280 = vst [vmem:[%s1126 + $0x4b8] sm:$0xff] %v1279
                %v1281 = vld [vmem:[%s1125 + $0x268] sm:$0xff]
                %1282 = vst [vmem:[%s1126 + $0x4c0] sm:$0xff] %v1281
                %v1283 = vld [vmem:[%s1125 + $0x270] sm:$0xff]
                %1284 = vst [vmem:[%s1126 + $0x4e0] sm:$0xff] %v1283
                %v1285 = vld [vmem:[%s1125 + $0x278] sm:$0xff]
                %1286 = vst [vmem:[%s1126 + $0x4e8] sm:$0xff] %v1285
                %v1287 = vld [vmem:[%s1125 + $0x280] sm:$0xff]
                %1288 = vst [vmem:[%s1126 + $0x4f0] sm:$0xff] %v1287
                %v1289 = vld [vmem:[%s1125 + $0x288] sm:$0xff]
                %1290 = vst [vmem:[%s1126 + $0x510] sm:$0xff] %v1289
                %v1291 = vld [vmem:[%s1125 + $0x290] sm:$0xff]
                %1292 = vst [vmem:[%s1126 + $0x518] sm:$0xff] %v1291
                %v1293 = vld [vmem:[%s1125 + $0x298] sm:$0xff]
                %1294 = vst [vmem:[%s1126 + $0x520] sm:$0xff] %v1293
                %v1295 = vld [vmem:[%s1125 + $0x2a0] sm:$0xff]
                %1296 = vst [vmem:[%s1126 + $0x540] sm:$0xff] %v1295
                %v1297 = vld [vmem:[%s1125 + $0x2a8] sm:$0xff]
                %1298 = vst [vmem:[%s1126 + $0x548] sm:$0xff] %v1297
                %v1299 = vld [vmem:[%s1125 + $0x2b0] sm:$0xff]
                %1300 = vst [vmem:[%s1126 + $0x550] sm:$0xff] %v1299
                %v1301 = vld [vmem:[%s1125 + $0x2b8] sm:$0xff]
                %1302 = vst [vmem:[%s1126 + $0x570] sm:$0xff] %v1301
                %v1303 = vld [vmem:[%s1125 + $0x2c0] sm:$0xff]
                %1304 = vst [vmem:[%s1126 + $0x578] sm:$0xff] %v1303
                %v1305 = vld [vmem:[%s1125 + $0x2c8] sm:$0xff]
                %1306 = vst [vmem:[%s1126 + $0x580] sm:$0xff] %v1305
                %v1307 = vld [vmem:[%s1125 + $0x2d0] sm:$0xff]
                %1308 = vst [vmem:[%s1126 + $0x5a0] sm:$0xff] %v1307
                %v1309 = vld [vmem:[%s1125 + $0x2d8] sm:$0xff]
                %1310 = vst [vmem:[%s1126 + $0x5a8] sm:$0xff] %v1309
                %v1311 = vld [vmem:[%s1125 + $0x2e0] sm:$0xff]
                %1312 = vst [vmem:[%s1126 + $0x5b0] sm:$0xff] %v1311
                %v1313 = vld [vmem:[%s1125 + $0x2e8] sm:$0xff]
                %1314 = vst [vmem:[%s1126 + $0x5d0] sm:$0xff] %v1313
                %v1315 = vld [vmem:[%s1125 + $0x2f0] sm:$0xff]
                %1316 = vst [vmem:[%s1126 + $0x5d8] sm:$0xff] %v1315
                %v1317 = vld [vmem:[%s1125 + $0x2f8] sm:$0xff]
                %1318 = vst [vmem:[%s1126 + $0x5e0] sm:$0xff] %v1317
              $region72: #{tpu_custom_call.1} parent=66 // loop_footer
                %s1124 = sadd.s32 1, %s1120
              $region73: #{tpu_custom_call.1} parent=66 // loop_footer_branch
                %1119 = sbr.rel target = $region69
              $region74: #{tpu_custom_call.1} parent=66 // loop_exit
                _
            $region67: #{tpu_custom_call.1} parent=62 // pred_fallthru
              _
            // Predicated region
            $region75: #{tpu_custom_call.1} parent=62 // pred_check
              _
            $region76: #{tpu_custom_call.1} parent=62 // pred_check_branch
              %1320 = sbr.rel target = $region78
            $region77: #{tpu_custom_call.1} parent=62 // pred_region
              _
            $region78: #{tpu_custom_call.1} parent=62 // pred_fallthru
              _
          $region63: #{tpu_custom_call.1} parent=58 // pred_fallthru
            _
          %1321 = vnop
        $region59: #{tpu_custom_call.1} parent=50 // pred_fallthru
          _
      $region51: #{tpu_custom_call.1} parent=5 // pred_fallthru
        _
      %p1322 = scmp.le.s32.totalorder 2, %s9
      // Predicated region
      $region79: #{tpu_custom_call.1} parent=5 // pred_check
        %p1323 = pneg %p1322
      $region80: #{tpu_custom_call.1} parent=5 // pred_check_branch
        %1325 = sbr.rel (%p1323) target = $region82
      $region81: #{tpu_custom_call.1} parent=5 // pred_region
        %s1326 = ssub.s32 %s9, 2
        // Predicated region
        $region83: #{tpu_custom_call.1} parent=81 // pred_check
          %p1327 = pneg %p106
        $region84: #{tpu_custom_call.1} parent=81 // pred_check_branch
          %1329 = sbr.rel (%p1327) target = $region86
        $region85: #{tpu_custom_call.1} parent=81 // pred_region
          %s1330 = sand.u32 %s91, 1
          %s1331 = sand.u32 %s91, 1
          %s1332 = smul.addr %s1331, 768
          %s1333 = scalar_lea.vmem [#allocation3], %s1332
        $region86: #{tpu_custom_call.1} parent=81 // pred_fallthru
          _
      $region82: #{tpu_custom_call.1} parent=5 // pred_fallthru
        _
    $region6: #{tpu_custom_call.1} parent=1 // loop_footer
      %s13 = sadd.s32 1, %s9
    $region7: #{tpu_custom_call.1} parent=1 // loop_footer_branch
      %8 = sbr.rel target = $region3
    $region8: #{tpu_custom_call.1} parent=1 // loop_exit
      _

</llo_original>
